<compile_context>
chip_gen: v6e
topology: v6e:2x2x1
jax: 0.10.0
libtpu: 0.0.40
codegen_flags: <defaults>
</compile_context>

<pallas_src>
import functools

import jax
import jax.numpy as jnp
from jax.experimental import pallas as pl
from jax.experimental.pallas import tpu as pltpu

IN_FEATURES = 28 * 28   # 784
HIDDEN = 64
LATENTS = 32


def _mlp_kernel(x_ref,
                w0_ref, b0_ref,
                w1_ref, b1_ref,
                w2_ref, b2_ref,
                w3_ref, b3_ref,
                w4_ref, b4_ref,
                o_ref):
    """Fused 784->64->64->64->64->32 MLP on one (TM, 784) batch tile."""
    # In-kernel cast to bf16 (cheap VPU pack, hidden under the input DMA);
    # the wrapper never materializes a separate bf16 copy of x in HBM.
    h = x_ref[...].astype(jnp.bfloat16)

    # Layer 0: Linear(784, 64) + ReLU
    acc = jnp.dot(h, w0_ref[...], preferred_element_type=jnp.float32)
    acc = acc + b0_ref[...]                                   # f32 epilogue
    h = jnp.maximum(acc, 0.0).astype(jnp.bfloat16)

    # Layer 1: Linear(64, 64) + ReLU
    acc = jnp.dot(h, w1_ref[...], preferred_element_type=jnp.float32)
    acc = acc + b1_ref[...]
    h = jnp.maximum(acc, 0.0).astype(jnp.bfloat16)

    # Layer 2: Linear(64, 64) + ReLU
    acc = jnp.dot(h, w2_ref[...], preferred_element_type=jnp.float32)
    acc = acc + b2_ref[...]
    h = jnp.maximum(acc, 0.0).astype(jnp.bfloat16)

    # Layer 3: Linear(64, 64) + ReLU
    acc = jnp.dot(h, w3_ref[...], preferred_element_type=jnp.float32)
    acc = acc + b3_ref[...]
    h = jnp.maximum(acc, 0.0).astype(jnp.bfloat16)

    # Layer 4: Linear(64, 32), no activation
    acc = jnp.dot(h, w4_ref[...], preferred_element_type=jnp.float32)
    acc = acc + b4_ref[...]
    o_ref[...] = acc.astype(o_ref.dtype)


def _round_up(n, m):
    return ((n + m - 1) // m) * m


def _chip_kind():
    try:
        return jax.devices()[0].device_kind.lower()
    except Exception:  # pragma: no cover - defensive, e.g. interpret mode
        return ""


def _pick_tile(batch):
    """Per-generation batch tile: amortize the ~0.35us per-grid-step overhead
    against that chip's HBM bandwidth while staying inside scoped VMEM with
    f32 inputs double-buffered."""
    kind = _chip_kind()
    if "v7" in kind:
        cap = 4096            # ~24.5 MiB f32 double-buffer; raise vmem limit
    elif "v6" in kind:
        cap = 2048            # ~12.3 MiB f32 double-buffer (< 32 MiB default)
    else:                     # v5e / unknown: 16 MiB scoped-VMEM default
        cap = 1024
    if batch >= cap:
        return cap
    return max(8, _round_up(batch, 8))


@functools.partial(jax.jit, static_argnames=("tm",))
def single_encoder_forward(x, params, tm=None):
    """Forward pass of SingleEncoder.

    Args:
      x: (B, 784) array (flattened 28x28 images, row-major like torch .view),
         any float dtype (cast to bf16 inside the kernel).
      params: list of 5 (W, b) pairs with W stored as (in_features, out_features)
              — i.e. transposed relative to nn.Linear's (out, in) storage —
              and b as (out_features,).
      tm: optional batch tile size (rows per grid step).
    Returns:
      (B, 32) float32 latents.
    """
    B, F = x.shape
    assert F == IN_FEATURES

    if tm is None:
        tm = _pick_tile(B)

    # Weights in bf16 (MXU operands, ~130 KB total — negligible convert cost),
    # biases in f32 as (1, N) rows for the f32 epilogue.
    flat_args = []
    in_specs = [pl.BlockSpec((tm, IN_FEATURES), lambda i: (i, 0))]
    for (w, b) in params:
        wb = w.astype(jnp.bfloat16)
        bb = b.astype(jnp.float32).reshape(1, -1)
        flat_args.append(wb)
        flat_args.append(bb)
        # Constant block index => weights/biases stay VMEM-resident across tiles.
        in_specs.append(pl.BlockSpec(wb.shape, lambda i: (0, 0)))
        in_specs.append(pl.BlockSpec(bb.shape, lambda i: (0, 0)))

    grid = (pl.cdiv(B, tm),)

    # Advisory cost hint so XLA can overlap neighbors with this mem-bound call.
    flops = 2 * B * (IN_FEATURES * HIDDEN + 3 * HIDDEN * HIDDEN
                     + HIDDEN * LATENTS)
    weight_bytes = sum(int(w.size) * 2 + int(b.size) * 4 for (w, b) in params)
    bytes_accessed = (B * IN_FEATURES * x.dtype.itemsize
                      + B * LATENTS * 4 + weight_bytes)

    vmem_limit = (48 << 20) if "v7" in _chip_kind() else None

    out = pl.pallas_call(
        _mlp_kernel,
        out_shape=jax.ShapeDtypeStruct((B, LATENTS), jnp.float32),
        grid=grid,
        in_specs=in_specs,
        out_specs=pl.BlockSpec((tm, LATENTS), lambda i: (i, 0)),
        compiler_params=pltpu.CompilerParams(
            dimension_semantics=("parallel",),
            vmem_limit_bytes=vmem_limit),
        cost_estimate=pl.CostEstimate(
            flops=flops, transcendentals=0, bytes_accessed=bytes_accessed),
    )(x, *flat_args)

    return out


def _init_params(key):
    """Random params, W stored as (in_features, out_features)."""
    dims = [IN_FEATURES, HIDDEN, HIDDEN, HIDDEN, HIDDEN, LATENTS]
    params = []
    for i in range(len(dims) - 1):
        key, kw, kb = jax.random.split(key, 3)
        fan_in = dims[i]
        scale = 1.0 / jnp.sqrt(fan_in)
        w = jax.random.uniform(kw, (dims[i], dims[i + 1]),
                               minval=-scale, maxval=scale, dtype=jnp.float32)
        b = jax.random.uniform(kb, (dims[i + 1],),
                               minval=-scale, maxval=scale, dtype=jnp.float32)
        params.append((w, b))
    return params


def _reference_forward(x, params):
    h = x.astype(jnp.float32)
    for li, (w, b) in enumerate(params):
        h = h @ w + b
        if li < len(params) - 1:
            h = jnp.maximum(h, 0.0)
    return h


if __name__ == "__main__":
    key = jax.random.PRNGKey(0)
    key, kx = jax.random.split(key)

    # Small example input consistent with the module: batch=2 MNIST images.
    x_img = jax.random.normal(kx, (2, 1, 28, 28), dtype=jnp.float32)
    x = x_img.reshape(2, -1)          # same as torch .view(B, -1)

    params = _init_params(key)

    out = single_encoder_forward(x, params)
    out = jax.block_until_ready(out)
    assert out.shape == (2, LATENTS)

    # Numerical sanity check against a pure-JAX reference (bf16 matmul tolerance).
    ref = _reference_forward(x, params)
    assert jnp.allclose(out, ref, rtol=5e-2, atol=5e-2), (
        float(jnp.max(jnp.abs(out - ref))))

    # Tail-masking test: B not divisible by tm (forces a partial tail block).
    key, kx2 = jax.random.split(key)
    x2 = jax.random.normal(kx2, (11, IN_FEATURES), dtype=jnp.float32)
    out2 = jax.block_until_ready(single_encoder_forward(x2, params, tm=8))
    ref2 = _reference_forward(x2, params)
    assert out2.shape == (11, LATENTS)
    assert jnp.allclose(out2, ref2, rtol=5e-2, atol=5e-2), (
        float(jnp.max(jnp.abs(out2 - ref2))))

    print("KERNEL_OK")
</pallas_src>

<mosaic_0001>
module attributes {stable_mosaic.version = 11 : i64} {
  func.func @_mlp_kernel(%arg0: i32, %arg1: memref<8x784xf32, #tpu.memory_space<vmem>>, %arg2: memref<784x64xbf16, #tpu.memory_space<vmem>>, %arg3: memref<1x64xf32, #tpu.memory_space<vmem>>, %arg4: memref<64x64xbf16, #tpu.memory_space<vmem>>, %arg5: memref<1x64xf32, #tpu.memory_space<vmem>>, %arg6: memref<64x64xbf16, #tpu.memory_space<vmem>>, %arg7: memref<1x64xf32, #tpu.memory_space<vmem>>, %arg8: memref<64x64xbf16, #tpu.memory_space<vmem>>, %arg9: memref<1x64xf32, #tpu.memory_space<vmem>>, %arg10: memref<64x32xbf16, #tpu.memory_space<vmem>>, %arg11: memref<1x32xf32, #tpu.memory_space<vmem>>, %arg12: memref<8x32xf32, #tpu.memory_space<vmem>>) attributes {dimension_semantics = [#tpu.dimension_semantics<parallel>], iteration_bounds = array<i64: 1>, scalar_prefetch = 0 : i64, scratch_operands = 0 : i64, tpu.core_type = #tpu.core_type<tc>, window_params = [{transform_indices = @transform_0, window_bounds = array<i64: 8, 784>}, {pipeline_mode = #tpu.pipeline_mode<synchronous>, transform_indices = @transform_1, window_bounds = array<i64: 784, 64>}, {pipeline_mode = #tpu.pipeline_mode<synchronous>, transform_indices = @transform_2, window_bounds = array<i64: 1, 64>}, {pipeline_mode = #tpu.pipeline_mode<synchronous>, transform_indices = @transform_3, window_bounds = array<i64: 64, 64>}, {pipeline_mode = #tpu.pipeline_mode<synchronous>, transform_indices = @transform_4, window_bounds = array<i64: 1, 64>}, {pipeline_mode = #tpu.pipeline_mode<synchronous>, transform_indices = @transform_5, window_bounds = array<i64: 64, 64>}, {pipeline_mode = #tpu.pipeline_mode<synchronous>, transform_indices = @transform_6, window_bounds = array<i64: 1, 64>}, {pipeline_mode = #tpu.pipeline_mode<synchronous>, transform_indices = @transform_7, window_bounds = array<i64: 64, 64>}, {pipeline_mode = #tpu.pipeline_mode<synchronous>, transform_indices = @transform_8, window_bounds = array<i64: 1, 64>}, {pipeline_mode = #tpu.pipeline_mode<synchronous>, transform_indices = @transform_9, window_bounds = array<i64: 64, 32>}, {pipeline_mode = #tpu.pipeline_mode<synchronous>, transform_indices = @transform_10, window_bounds = array<i64: 1, 32>}, {transform_indices = @transform_11, window_bounds = array<i64: 8, 32>}]} {
    %c0 = arith.constant 0 : index
    %c0_0 = arith.constant 0 : index
    %0 = vector.load %arg1[%c0, %c0_0] : memref<8x784xf32, #tpu.memory_space<vmem>>, vector<8x784xf32>
    %1 = arith.truncf %0 : vector<8x784xf32> to vector<8x784xbf16>
    %c0_1 = arith.constant 0 : index
    %c0_2 = arith.constant 0 : index
    %2 = vector.load %arg2[%c0_1, %c0_2] : memref<784x64xbf16, #tpu.memory_space<vmem>>, vector<784x64xbf16>
    %cst = arith.constant dense<0.000000e+00> : vector<8x64xf32>
    %3 = tpu.matmul %1, %2, %cst {dimension_numbers = #tpu.dot_dimension_numbers<[1], [0], [0], [1], [0, 0, 1, 1], [], []>} : vector<8x784xbf16>, vector<784x64xbf16>, vector<8x64xf32> -> vector<8x64xf32>
    %c0_3 = arith.constant 0 : index
    %c0_4 = arith.constant 0 : index
    %4 = vector.load %arg3[%c0_3, %c0_4] : memref<1x64xf32, #tpu.memory_space<vmem>>, vector<1x64xf32>
    %5 = vector.broadcast %4 : vector<1x64xf32> to vector<8x64xf32>
    %6 = arith.addf %3, %5 : vector<8x64xf32>
    %cst_5 = arith.constant 0.000000e+00 : f32
    %7 = vector.broadcast %cst_5 : f32 to vector<8x64xf32>
    %8 = arith.maximumf %6, %7 : vector<8x64xf32>
    %9 = arith.truncf %8 : vector<8x64xf32> to vector<8x64xbf16>
    %c0_6 = arith.constant 0 : index
    %c0_7 = arith.constant 0 : index
    %10 = vector.load %arg4[%c0_6, %c0_7] : memref<64x64xbf16, #tpu.memory_space<vmem>>, vector<64x64xbf16>
    %cst_8 = arith.constant dense<0.000000e+00> : vector<8x64xf32>
    %11 = tpu.matmul %9, %10, %cst_8 {dimension_numbers = #tpu.dot_dimension_numbers<[1], [0], [0], [1], [0, 0, 1, 1], [], []>} : vector<8x64xbf16>, vector<64x64xbf16>, vector<8x64xf32> -> vector<8x64xf32>
    %c0_9 = arith.constant 0 : index
    %c0_10 = arith.constant 0 : index
    %12 = vector.load %arg5[%c0_9, %c0_10] : memref<1x64xf32, #tpu.memory_space<vmem>>, vector<1x64xf32>
    %13 = vector.broadcast %12 : vector<1x64xf32> to vector<8x64xf32>
    %14 = arith.addf %11, %13 : vector<8x64xf32>
    %cst_11 = arith.constant 0.000000e+00 : f32
    %15 = vector.broadcast %cst_11 : f32 to vector<8x64xf32>
    %16 = arith.maximumf %14, %15 : vector<8x64xf32>
    %17 = arith.truncf %16 : vector<8x64xf32> to vector<8x64xbf16>
    %c0_12 = arith.constant 0 : index
    %c0_13 = arith.constant 0 : index
    %18 = vector.load %arg6[%c0_12, %c0_13] : memref<64x64xbf16, #tpu.memory_space<vmem>>, vector<64x64xbf16>
    %cst_14 = arith.constant dense<0.000000e+00> : vector<8x64xf32>
    %19 = tpu.matmul %17, %18, %cst_14 {dimension_numbers = #tpu.dot_dimension_numbers<[1], [0], [0], [1], [0, 0, 1, 1], [], []>} : vector<8x64xbf16>, vector<64x64xbf16>, vector<8x64xf32> -> vector<8x64xf32>
    %c0_15 = arith.constant 0 : index
    %c0_16 = arith.constant 0 : index
    %20 = vector.load %arg7[%c0_15, %c0_16] : memref<1x64xf32, #tpu.memory_space<vmem>>, vector<1x64xf32>
    %21 = vector.broadcast %20 : vector<1x64xf32> to vector<8x64xf32>
    %22 = arith.addf %19, %21 : vector<8x64xf32>
    %cst_17 = arith.constant 0.000000e+00 : f32
    %23 = vector.broadcast %cst_17 : f32 to vector<8x64xf32>
    %24 = arith.maximumf %22, %23 : vector<8x64xf32>
    %25 = arith.truncf %24 : vector<8x64xf32> to vector<8x64xbf16>
    %c0_18 = arith.constant 0 : index
    %c0_19 = arith.constant 0 : index
    %26 = vector.load %arg8[%c0_18, %c0_19] : memref<64x64xbf16, #tpu.memory_space<vmem>>, vector<64x64xbf16>
    %cst_20 = arith.constant dense<0.000000e+00> : vector<8x64xf32>
    %27 = tpu.matmul %25, %26, %cst_20 {dimension_numbers = #tpu.dot_dimension_numbers<[1], [0], [0], [1], [0, 0, 1, 1], [], []>} : vector<8x64xbf16>, vector<64x64xbf16>, vector<8x64xf32> -> vector<8x64xf32>
    %c0_21 = arith.constant 0 : index
    %c0_22 = arith.constant 0 : index
    %28 = vector.load %arg9[%c0_21, %c0_22] : memref<1x64xf32, #tpu.memory_space<vmem>>, vector<1x64xf32>
    %29 = vector.broadcast %28 : vector<1x64xf32> to vector<8x64xf32>
    %30 = arith.addf %27, %29 : vector<8x64xf32>
    %cst_23 = arith.constant 0.000000e+00 : f32
    %31 = vector.broadcast %cst_23 : f32 to vector<8x64xf32>
    %32 = arith.maximumf %30, %31 : vector<8x64xf32>
    %33 = arith.truncf %32 : vector<8x64xf32> to vector<8x64xbf16>
    %c0_24 = arith.constant 0 : index
    %c0_25 = arith.constant 0 : index
    %34 = vector.load %arg10[%c0_24, %c0_25] : memref<64x32xbf16, #tpu.memory_space<vmem>>, vector<64x32xbf16>
    %cst_26 = arith.constant dense<0.000000e+00> : vector<8x32xf32>
    %35 = tpu.matmul %33, %34, %cst_26 {dimension_numbers = #tpu.dot_dimension_numbers<[1], [0], [0], [1], [0, 0, 1, 1], [], []>} : vector<8x64xbf16>, vector<64x32xbf16>, vector<8x32xf32> -> vector<8x32xf32>
    %c0_27 = arith.constant 0 : index
    %c0_28 = arith.constant 0 : index
    %36 = vector.load %arg11[%c0_27, %c0_28] : memref<1x32xf32, #tpu.memory_space<vmem>>, vector<1x32xf32>
    %37 = vector.broadcast %36 : vector<1x32xf32> to vector<8x32xf32>
    %38 = arith.addf %35, %37 : vector<8x32xf32>
    %c0_29 = arith.constant 0 : index
    %c0_30 = arith.constant 0 : index
    %39 = vector.load %arg12[%c0_29, %c0_30] : memref<8x32xf32, #tpu.memory_space<vmem>>, vector<8x32xf32>
    tpu.vector_store %arg12[%c0_29, %c0_30], %38 {strides = array<i32>} : memref<8x32xf32, #tpu.memory_space<vmem>>, vector<8x32xf32>,
    return
  }
  func.func @transform_0(%arg0: i32) -> (i32, i32) {
    %c0_i32 = arith.constant 0 : i32
    %c0_i32_0 = arith.constant 0 : i32
    return %arg0, %c0_i32 : i32, i32
  }
  func.func @transform_1(%arg0: i32) -> (i32, i32) {
    %c0_i32 = arith.constant 0 : i32
    %c0_i32_0 = arith.constant 0 : i32
    %c0_i32_1 = arith.constant 0 : i32
    return %c0_i32, %c0_i32_0 : i32, i32
  }
  func.func @transform_2(%arg0: i32) -> (i32, i32) {
    %c0_i32 = arith.constant 0 : i32
    %c0_i32_0 = arith.constant 0 : i32
    %c0_i32_1 = arith.constant 0 : i32
    return %c0_i32, %c0_i32_0 : i32, i32
  }
  func.func @transform_3(%arg0: i32) -> (i32, i32) {
    %c0_i32 = arith.constant 0 : i32
    %c0_i32_0 = arith.constant 0 : i32
    %c0_i32_1 = arith.constant 0 : i32
    return %c0_i32, %c0_i32_0 : i32, i32
  }
  func.func @transform_4(%arg0: i32) -> (i32, i32) {
    %c0_i32 = arith.constant 0 : i32
    %c0_i32_0 = arith.constant 0 : i32
    %c0_i32_1 = arith.constant 0 : i32
    return %c0_i32, %c0_i32_0 : i32, i32
  }
  func.func @transform_5(%arg0: i32) -> (i32, i32) {
    %c0_i32 = arith.constant 0 : i32
    %c0_i32_0 = arith.constant 0 : i32
    %c0_i32_1 = arith.constant 0 : i32
    return %c0_i32, %c0_i32_0 : i32, i32
  }
  func.func @transform_6(%arg0: i32) -> (i32, i32) {
    %c0_i32 = arith.constant 0 : i32
    %c0_i32_0 = arith.constant 0 : i32
    %c0_i32_1 = arith.constant 0 : i32
    return %c0_i32, %c0_i32_0 : i32, i32
  }
  func.func @transform_7(%arg0: i32) -> (i32, i32) {
    %c0_i32 = arith.constant 0 : i32
    %c0_i32_0 = arith.constant 0 : i32
    %c0_i32_1 = arith.constant 0 : i32
    return %c0_i32, %c0_i32_0 : i32, i32
  }
  func.func @transform_8(%arg0: i32) -> (i32, i32) {
    %c0_i32 = arith.constant 0 : i32
    %c0_i32_0 = arith.constant 0 : i32
    %c0_i32_1 = arith.constant 0 : i32
    return %c0_i32, %c0_i32_0 : i32, i32
  }
  func.func @transform_9(%arg0: i32) -> (i32, i32) {
    %c0_i32 = arith.constant 0 : i32
    %c0_i32_0 = arith.constant 0 : i32
    %c0_i32_1 = arith.constant 0 : i32
    return %c0_i32, %c0_i32_0 : i32, i32
  }
  func.func @transform_10(%arg0: i32) -> (i32, i32) {
    %c0_i32 = arith.constant 0 : i32
    %c0_i32_0 = arith.constant 0 : i32
    %c0_i32_1 = arith.constant 0 : i32
    return %c0_i32, %c0_i32_0 : i32, i32
  }
  func.func @transform_11(%arg0: i32) -> (i32, i32) {
    %c0_i32 = arith.constant 0 : i32
    %c0_i32_0 = arith.constant 0 : i32
    return %arg0, %c0_i32 : i32, i32
  }
}

</mosaic_0001>

<llo_original>
// kernel: single_encoder_forward.1
$region0: #{single_encoder_forward.1}
  #allocation0 [shape = 'u32[]', space=smem, size = 0x4, offset = 0x4, fixed_abs, tag = 'smem constant byte address 0x4 - core index']
  #allocation1 [shape = 'u32[144,128]{1,0:T(1,128)}', space=vmem, size = 0x12000, scoped, tag = 'internal scratch']
  %s0 = inlined_call_operand.vmem [shape: f32[2,784], index: 0, kind: input, shape index: {}]
  %s1 = inlined_call_operand.vmem [shape: bf16[784,64], index: 1, kind: input, shape index: {}]
  %s2 = inlined_call_operand.vmem [shape: f32[1,64], index: 2, kind: input, shape index: {}]
  %s3 = inlined_call_operand.vmem [shape: bf16[64,64], index: 3, kind: input, shape index: {}]
  %s4 = inlined_call_operand.vmem [shape: f32[1,64], index: 4, kind: input, shape index: {}]
  %s5 = inlined_call_operand.vmem [shape: bf16[64,64], index: 5, kind: input, shape index: {}]
  %s6 = inlined_call_operand.vmem [shape: f32[1,64], index: 6, kind: input, shape index: {}]
  %s7 = inlined_call_operand.vmem [shape: bf16[64,64], index: 7, kind: input, shape index: {}]
  %s8 = inlined_call_operand.vmem [shape: f32[1,64], index: 8, kind: input, shape index: {}]
  %s9 = inlined_call_operand.vmem [shape: bf16[64,32], index: 9, kind: input, shape index: {}]
  %s10 = inlined_call_operand.vmem [shape: f32[1,32], index: 10, kind: input, shape index: {}]
  %s11 = inlined_call_operand.hbm [shape: f32[2,32], index: 11, kind: output, shape index: {}]
  %s12 = sld [smem:[#allocation0]]
  $region54: #{single_encoder_forward.1} parent=0
    _
  %s14 = ssub.s32 1, %s12
  %s15 = scalar_select 0, %s14, %s12
  $region1: #{single_encoder_forward.1} parent=0
    #allocation2 [shape = 'u8[4096]{0}', space=vmem, size = 0x1000, scoped, tag = 'output window, operand 0, single buffered']
    #allocation3 [shape = 's32[1]{0}', space=sflag, size = 0x4, scoped, tag = 'scoped memory for single_encoder_forward.1']
    %16 = vsyncpa [#allocation3], 0
    // Predicated region
    $region2: #{single_encoder_forward.1} parent=1 // pred_check
      _
    $region3: #{single_encoder_forward.1} parent=1 // pred_check_branch
      %18 = sbr.rel (0) target = $region5
    $region4: #{single_encoder_forward.1} parent=1 // pred_region
      _
    $region5: #{single_encoder_forward.1} parent=1 // pred_fallthru
      _
    // Predicated region
    $region6: #{single_encoder_forward.1} parent=1 // pred_check
      _
    $region7: #{single_encoder_forward.1} parent=1 // pred_check_branch
      %20 = sbr.rel (0) target = $region9
    $region8: #{single_encoder_forward.1} parent=1 // pred_region
      _
    $region9: #{single_encoder_forward.1} parent=1 // pred_fallthru
      _
    // Predicated region
    $region10: #{single_encoder_forward.1} parent=1 // pred_check
      _
    $region11: #{single_encoder_forward.1} parent=1 // pred_check_branch
      %22 = sbr.rel (0) target = $region13
    $region12: #{single_encoder_forward.1} parent=1 // pred_region
      _
    $region13: #{single_encoder_forward.1} parent=1 // pred_fallthru
      _
    // Predicated region
    $region14: #{single_encoder_forward.1} parent=1 // pred_check
      _
    $region15: #{single_encoder_forward.1} parent=1 // pred_check_branch
      %24 = sbr.rel (0) target = $region17
    $region16: #{single_encoder_forward.1} parent=1 // pred_region
      _
    $region17: #{single_encoder_forward.1} parent=1 // pred_fallthru
      _
    // Predicated region
    $region18: #{single_encoder_forward.1} parent=1 // pred_check
      _
    $region19: #{single_encoder_forward.1} parent=1 // pred_check_branch
      %26 = sbr.rel (0) target = $region21
    $region20: #{single_encoder_forward.1} parent=1 // pred_region
      _
    $region21: #{single_encoder_forward.1} parent=1 // pred_fallthru
      _
    // Predicated region
    $region22: #{single_encoder_forward.1} parent=1 // pred_check
      _
    $region23: #{single_encoder_forward.1} parent=1 // pred_check_branch
      %28 = sbr.rel (0) target = $region25
    $region24: #{single_encoder_forward.1} parent=1 // pred_region
      _
    $region25: #{single_encoder_forward.1} parent=1 // pred_fallthru
      _
    // Predicated region
    $region26: #{single_encoder_forward.1} parent=1 // pred_check
      _
    $region27: #{single_encoder_forward.1} parent=1 // pred_check_branch
      %30 = sbr.rel (0) target = $region29
    $region28: #{single_encoder_forward.1} parent=1 // pred_region
      _
    $region29: #{single_encoder_forward.1} parent=1 // pred_fallthru
      _
    // Predicated region
    $region30: #{single_encoder_forward.1} parent=1 // pred_check
      _
    $region31: #{single_encoder_forward.1} parent=1 // pred_check_branch
      %32 = sbr.rel (0) target = $region33
    $region32: #{single_encoder_forward.1} parent=1 // pred_region
      _
    $region33: #{single_encoder_forward.1} parent=1 // pred_fallthru
      _
    // Predicated region
    $region34: #{single_encoder_forward.1} parent=1 // pred_check
      _
    $region35: #{single_encoder_forward.1} parent=1 // pred_check_branch
      %34 = sbr.rel (0) target = $region37
    $region36: #{single_encoder_forward.1} parent=1 // pred_region
      _
    $region37: #{single_encoder_forward.1} parent=1 // pred_fallthru
      _
    // Predicated region
    $region38: #{single_encoder_forward.1} parent=1 // pred_check
      _
    $region39: #{single_encoder_forward.1} parent=1 // pred_check_branch
      %36 = sbr.rel (0) target = $region41
    $region40: #{single_encoder_forward.1} parent=1 // pred_region
      _
    $region41: #{single_encoder_forward.1} parent=1 // pred_fallthru
      _
    // Predicated region
    $region42: #{single_encoder_forward.1} parent=1 // pred_check
      _
    $region43: #{single_encoder_forward.1} parent=1 // pred_check_branch
      %38 = sbr.rel (0) target = $region45
    $region44: #{single_encoder_forward.1} parent=1 // pred_region
      _
    $region45: #{single_encoder_forward.1} parent=1 // pred_fallthru
      _
    %v40 = vld [vmem:[%s0] sm:$0xff]
    %v41 = vld [vmem:[%s0 + $0x8] sm:$0x3f]
    %v42 = vld [vmem:[%s0 + $0xe] sm:$0xff]
    %v43 = vld [vmem:[%s0 + $0x16] sm:$0x3f]
    %v44 = vld [vmem:[%s0 + $0x1c] sm:$0xff]
    %v45 = vld [vmem:[%s0 + $0x24] sm:$0x3f]
    %v46 = vld [vmem:[%s0 + $0x2a] sm:$0xff]
    %v47 = vld [vmem:[%s0 + $0x32] sm:$0x3f]
    %v56 = vcombine.low %v40, %v42
    %v57 = vcombine.high %v40, %v42
    %v58 = vcombine.low %v44, %v46
    %v59 = vcombine.high %v44, %v46
    %v61 = vunpack.c.l.s4 1983009808
    %v62 = vunpack.c.0.s8 %v61
    %v63 = vlaneseq
    %v64 = vshrl.u32 %v63, 7
    %v65 = vsub.s32 %v62, %v64
    %v66 = vrot.slane %v56, %v65
    %v68 = vunpack.c.l.s4 1983009808
    %v69 = vunpack.c.0.s8 %v68
    %v70 = vlaneseq
    %v71 = vshrl.u32 %v70, 7
    %v72 = vsub.s32 %v69, %v71
    %v73 = vrot.slane %v57, %v72
    %v75 = vunpack.c.l.s4 1983009808
    %v76 = vunpack.c.0.s8 %v75
    %v77 = vlaneseq
    %v78 = vshrl.u32 %v77, 7
    %v79 = vsub.s32 %v76, %v78
    %v80 = vrot.slane %v58, %v79
    %v82 = vunpack.c.l.s4 1983009808
    %v83 = vunpack.c.0.s8 %v82
    %v84 = vlaneseq
    %v85 = vshrl.u32 %v84, 7
    %v86 = vsub.s32 %v83, %v85
    %v87 = vrot.slane %v59, %v86
    %v88 = vcombine.low %v66, %v80
    %v89 = vcombine.high %v66, %v80
    %v90 = vcombine.low %v73, %v87
    %v91 = vcombine.high %v73, %v87
    %v92 = vcombine.low %v41, %v43
    %v93 = vcombine.high %v41, %v43
    %v94 = vcombine.low %v45, %v47
    %v95 = vcombine.high %v45, %v47
    %v97 = vunpack.c.l.s4 1983009808
    %v98 = vunpack.c.0.s8 %v97
    %v99 = vlaneseq
    %v100 = vshrl.u32 %v99, 7
    %v101 = vsub.s32 %v98, %v100
    %v102 = vrot.slane %v92, %v101
    %v104 = vunpack.c.l.s4 1983009808
    %v105 = vunpack.c.0.s8 %v104
    %v106 = vlaneseq
    %v107 = vshrl.u32 %v106, 7
    %v108 = vsub.s32 %v105, %v107
    %v109 = vrot.slane %v93, %v108
    %v111 = vunpack.c.l.s4 1983009808
    %v112 = vunpack.c.0.s8 %v111
    %v113 = vlaneseq
    %v114 = vshrl.u32 %v113, 7
    %v115 = vsub.s32 %v112, %v114
    %v116 = vrot.slane %v94, %v115
    %v118 = vunpack.c.l.s4 1983009808
    %v119 = vunpack.c.0.s8 %v118
    %v120 = vlaneseq
    %v121 = vshrl.u32 %v120, 7
    %v122 = vsub.s32 %v119, %v121
    %v123 = vrot.slane %v95, %v122
    %v124 = vcombine.low %v102, %v116
    %v125 = vcombine.high %v102, %v116
    %v126 = vcombine.low %v109, %v123
    %v134 = vpack.c.bf16 %v88, %v88
    %v135 = vpack.c.bf16 %v89, %v89
    %v136 = vpack.c.bf16 %v90, %v90
    %v137 = vpack.c.bf16 %v91, %v91
    %v138 = vpack.c.bf16 %v124, %v124
    %v139 = vpack.c.bf16 %v125, %v125
    %v140 = vpack.c.bf16 %v126, %v126
    %v141 = vld [vmem:[%s1] sm:$0xf]
    %v142 = vld [vmem:[%s1 + $0x4] sm:$0xf]
    %v143 = vld [vmem:[%s1 + $0x8] sm:$0xf]
    %v144 = vld [vmem:[%s1 + $0xc] sm:$0xf]
    %v145 = vld [vmem:[%s1 + $0x10] sm:$0xf]
    %v146 = vld [vmem:[%s1 + $0x14] sm:$0xf]
    %v147 = vld [vmem:[%s1 + $0x18] sm:$0xf]
    %v148 = vld [vmem:[%s1 + $0x1c] sm:$0xf]
    %v149 = vld [vmem:[%s1 + $0x20] sm:$0xf]
    %v150 = vld [vmem:[%s1 + $0x24] sm:$0xf]
    %v151 = vld [vmem:[%s1 + $0x28] sm:$0xf]
    %v152 = vld [vmem:[%s1 + $0x2c] sm:$0xf]
    %v153 = vld [vmem:[%s1 + $0x30] sm:$0xf]
    %v154 = vld [vmem:[%s1 + $0x34] sm:$0xf]
    %v155 = vld [vmem:[%s1 + $0x38] sm:$0xf]
    %v156 = vld [vmem:[%s1 + $0x3c] sm:$0xf]
    %v157 = vld [vmem:[%s1 + $0x40] sm:$0xf]
    %v158 = vld [vmem:[%s1 + $0x44] sm:$0xf]
    %v159 = vld [vmem:[%s1 + $0x48] sm:$0xf]
    %v160 = vld [vmem:[%s1 + $0x4c] sm:$0xf]
    %v161 = vld [vmem:[%s1 + $0x50] sm:$0xf]
    %v162 = vld [vmem:[%s1 + $0x54] sm:$0xf]
    %v163 = vld [vmem:[%s1 + $0x58] sm:$0xf]
    %v164 = vld [vmem:[%s1 + $0x5c] sm:$0xf]
    %v165 = vld [vmem:[%s1 + $0x60] sm:$0xf]
    %v166 = vld [vmem:[%s1 + $0x64] sm:$0xf]
    %v167 = vld [vmem:[%s1 + $0x68] sm:$0xf]
    %v168 = vld [vmem:[%s1 + $0x6c] sm:$0xf]
    %v169 = vld [vmem:[%s1 + $0x70] sm:$0xf]
    %v170 = vld [vmem:[%s1 + $0x74] sm:$0xf]
    %v171 = vld [vmem:[%s1 + $0x78] sm:$0xf]
    %v172 = vld [vmem:[%s1 + $0x7c] sm:$0xf]
    %v173 = vld [vmem:[%s1 + $0x80] sm:$0xf]
    %v174 = vld [vmem:[%s1 + $0x84] sm:$0xf]
    %v175 = vld [vmem:[%s1 + $0x88] sm:$0xf]
    %v176 = vld [vmem:[%s1 + $0x8c] sm:$0xf]
    %v177 = vld [vmem:[%s1 + $0x90] sm:$0xf]
    %v178 = vld [vmem:[%s1 + $0x94] sm:$0xf]
    %v179 = vld [vmem:[%s1 + $0x98] sm:$0xf]
    %v180 = vld [vmem:[%s1 + $0x9c] sm:$0xf]
    %v181 = vld [vmem:[%s1 + $0xa0] sm:$0xf]
    %v182 = vld [vmem:[%s1 + $0xa4] sm:$0xf]
    %v183 = vld [vmem:[%s1 + $0xa8] sm:$0xf]
    %v184 = vld [vmem:[%s1 + $0xac] sm:$0xf]
    %v185 = vld [vmem:[%s1 + $0xb0] sm:$0xf]
    %v186 = vld [vmem:[%s1 + $0xb4] sm:$0xf]
    %v187 = vld [vmem:[%s1 + $0xb8] sm:$0xf]
    %v188 = vld [vmem:[%s1 + $0xbc] sm:$0xf]
    %v189 = vld [vmem:[%s1 + $0xc0] sm:$0xf]
    %v190 = vld [vmem:[%s1 + $0xc4] sm:$0xf]
    %v191 = vld [vmem:[%s1 + $0xc8] sm:$0xf]
    %v192 = vld [vmem:[%s1 + $0xcc] sm:$0xf]
    %v193 = vld [vmem:[%s1 + $0xd0] sm:$0xf]
    %v194 = vld [vmem:[%s1 + $0xd4] sm:$0xf]
    %v195 = vld [vmem:[%s1 + $0xd8] sm:$0xf]
    %v196 = vld [vmem:[%s1 + $0xdc] sm:$0xf]
    %v197 = vld [vmem:[%s1 + $0xe0] sm:$0xf]
    %v198 = vld [vmem:[%s1 + $0xe4] sm:$0xf]
    %v199 = vld [vmem:[%s1 + $0xe8] sm:$0xf]
    %v200 = vld [vmem:[%s1 + $0xec] sm:$0xf]
    %v201 = vld [vmem:[%s1 + $0xf0] sm:$0xf]
    %v202 = vld [vmem:[%s1 + $0xf4] sm:$0xf]
    %v203 = vld [vmem:[%s1 + $0xf8] sm:$0xf]
    %v204 = vld [vmem:[%s1 + $0xfc] sm:$0xf]
    %v205 = vld [vmem:[%s1 + $0x100] sm:$0xf]
    %v206 = vld [vmem:[%s1 + $0x104] sm:$0xf]
    %v207 = vld [vmem:[%s1 + $0x108] sm:$0xf]
    %v208 = vld [vmem:[%s1 + $0x10c] sm:$0xf]
    %v209 = vld [vmem:[%s1 + $0x110] sm:$0xf]
    %v210 = vld [vmem:[%s1 + $0x114] sm:$0xf]
    %v211 = vld [vmem:[%s1 + $0x118] sm:$0xf]
    %v212 = vld [vmem:[%s1 + $0x11c] sm:$0xf]
    %v213 = vld [vmem:[%s1 + $0x120] sm:$0xf]
    %v214 = vld [vmem:[%s1 + $0x124] sm:$0xf]
    %v215 = vld [vmem:[%s1 + $0x128] sm:$0xf]
    %v216 = vld [vmem:[%s1 + $0x12c] sm:$0xf]
    %v217 = vld [vmem:[%s1 + $0x130] sm:$0xf]
    %v218 = vld [vmem:[%s1 + $0x134] sm:$0xf]
    %v219 = vld [vmem:[%s1 + $0x138] sm:$0xf]
    %v220 = vld [vmem:[%s1 + $0x13c] sm:$0xf]
    %v221 = vld [vmem:[%s1 + $0x140] sm:$0xf]
    %v222 = vld [vmem:[%s1 + $0x144] sm:$0xf]
    %v223 = vld [vmem:[%s1 + $0x148] sm:$0xf]
    %v224 = vld [vmem:[%s1 + $0x14c] sm:$0xf]
    %v225 = vld [vmem:[%s1 + $0x150] sm:$0xf]
    %v226 = vld [vmem:[%s1 + $0x154] sm:$0xf]
    %v227 = vld [vmem:[%s1 + $0x158] sm:$0xf]
    %v228 = vld [vmem:[%s1 + $0x15c] sm:$0xf]
    %v229 = vld [vmem:[%s1 + $0x160] sm:$0xf]
    %v230 = vld [vmem:[%s1 + $0x164] sm:$0xf]
    %v231 = vld [vmem:[%s1 + $0x168] sm:$0xf]
    %v232 = vld [vmem:[%s1 + $0x16c] sm:$0xf]
    %v233 = vld [vmem:[%s1 + $0x170] sm:$0xf]
    %v234 = vld [vmem:[%s1 + $0x174] sm:$0xf]
    %v235 = vld [vmem:[%s1 + $0x178] sm:$0xf]
    %v236 = vld [vmem:[%s1 + $0x17c] sm:$0xf]
    %v237 = vld [vmem:[%s1 + $0x180] sm:$0xf]
    %v238 = vld [vmem:[%s1 + $0x184] sm:$0xf]
    %v239 = vld [vmem:[%s2] sm:$0x1]
    %v241 = vlaneseq
    %v242 = vshrl.u32 %v241, 7
    %v243 = vsub.s32 0, %v242
    %v244 = vrot.slane %v239, %v243
    %v344 = vunpack.c.l.b16 %v141
    %v345 = vunpack.c.l.b16 %v142
    %v346 = vunpack.c.l.b16 %v143
    %v347 = vunpack.c.l.b16 %v144
    %v348 = vunpack.c.l.b16 %v145
    %v349 = vunpack.c.l.b16 %v146
    %v350 = vunpack.c.l.b16 %v147
    %v351 = vunpack.c.l.b16 %v148
    %v352 = vunpack.c.l.b16 %v149
    %v353 = vunpack.c.l.b16 %v150
    %v354 = vunpack.c.l.b16 %v151
    %v355 = vunpack.c.l.b16 %v152
    %v356 = vunpack.c.l.b16 %v153
    %v357 = vunpack.c.l.b16 %v154
    %v358 = vunpack.c.l.b16 %v155
    %v359 = vunpack.c.l.b16 %v156
    %v360 = vunpack.c.l.b16 %v157
    %v361 = vunpack.c.l.b16 %v158
    %v362 = vunpack.c.l.b16 %v159
    %v363 = vunpack.c.l.b16 %v160
    %v364 = vunpack.c.l.b16 %v161
    %v365 = vunpack.c.l.b16 %v162
    %v366 = vunpack.c.l.b16 %v163
    %v367 = vunpack.c.l.b16 %v164
    %v368 = vunpack.c.l.b16 %v165
    %v369 = vunpack.c.l.b16 %v166
    %v370 = vunpack.c.l.b16 %v167
    %v371 = vunpack.c.l.b16 %v168
    %v372 = vunpack.c.l.b16 %v169
    %v373 = vunpack.c.l.b16 %v170
    %v374 = vunpack.c.l.b16 %v171
    %v375 = vunpack.c.l.b16 %v172
    %v376 = vunpack.c.l.b16 %v173
    %v377 = vunpack.c.l.b16 %v174
    %v378 = vunpack.c.l.b16 %v175
    %v379 = vunpack.c.l.b16 %v176
    %v380 = vunpack.c.l.b16 %v177
    %v381 = vunpack.c.l.b16 %v178
    %v382 = vunpack.c.l.b16 %v179
    %v383 = vunpack.c.l.b16 %v180
    %v384 = vunpack.c.l.b16 %v181
    %v385 = vunpack.c.l.b16 %v182
    %v386 = vunpack.c.l.b16 %v183
    %v387 = vunpack.c.l.b16 %v184
    %v388 = vunpack.c.l.b16 %v185
    %v389 = vunpack.c.l.b16 %v186
    %v390 = vunpack.c.l.b16 %v187
    %v391 = vunpack.c.l.b16 %v188
    %v392 = vunpack.c.l.b16 %v189
    %v393 = vunpack.c.l.b16 %v190
    %v394 = vunpack.c.l.b16 %v191
    %v395 = vunpack.c.l.b16 %v192
    %v396 = vunpack.c.l.b16 %v193
    %v397 = vunpack.c.l.b16 %v194
    %v398 = vunpack.c.l.b16 %v195
    %v399 = vunpack.c.l.b16 %v196
    %v400 = vunpack.c.l.b16 %v197
    %v401 = vunpack.c.l.b16 %v198
    %v402 = vunpack.c.l.b16 %v199
    %v403 = vunpack.c.l.b16 %v200
    %v404 = vunpack.c.l.b16 %v201
    %v405 = vunpack.c.l.b16 %v202
    %v406 = vunpack.c.l.b16 %v203
    %v407 = vunpack.c.l.b16 %v204
    %v408 = vunpack.c.l.b16 %v205
    %v409 = vunpack.c.l.b16 %v206
    %v410 = vunpack.c.l.b16 %v207
    %v411 = vunpack.c.l.b16 %v208
    %v412 = vunpack.c.l.b16 %v209
    %v413 = vunpack.c.l.b16 %v210
    %v414 = vunpack.c.l.b16 %v211
    %v415 = vunpack.c.l.b16 %v212
    %v416 = vunpack.c.l.b16 %v213
    %v417 = vunpack.c.l.b16 %v214
    %v418 = vunpack.c.l.b16 %v215
    %v419 = vunpack.c.l.b16 %v216
    %v420 = vunpack.c.l.b16 %v217
    %v421 = vunpack.c.l.b16 %v218
    %v422 = vunpack.c.l.b16 %v219
    %v423 = vunpack.c.l.b16 %v220
    %v424 = vunpack.c.l.b16 %v221
    %v425 = vunpack.c.l.b16 %v222
    %v426 = vunpack.c.l.b16 %v223
    %v427 = vunpack.c.l.b16 %v224
    %v428 = vunpack.c.l.b16 %v225
    %v429 = vunpack.c.l.b16 %v226
    %v430 = vunpack.c.l.b16 %v227
    %v431 = vunpack.c.l.b16 %v228
    %v432 = vunpack.c.l.b16 %v229
    %v433 = vunpack.c.l.b16 %v230
    %v434 = vunpack.c.l.b16 %v231
    %v435 = vunpack.c.l.b16 %v232
    %v436 = vunpack.c.l.b16 %v233
    %v437 = vunpack.c.l.b16 %v234
    %v438 = vunpack.c.l.b16 %v235
    %v439 = vunpack.c.l.b16 %v236
    %v440 = vunpack.c.l.b16 %v237
    %v441 = vunpack.c.l.b16 %v238
    %v442 = vpack.c.b16 %v345, %v344
    %v443 = vpack.c.b16 %v347, %v346
    %v444 = vpack.c.b16 %v349, %v348
    %v445 = vpack.c.b16 %v351, %v350
    %v446 = vpack.c.b16 %v353, %v352
    %v447 = vpack.c.b16 %v355, %v354
    %v448 = vpack.c.b16 %v357, %v356
    %v449 = vpack.c.b16 %v359, %v358
    %v450 = vpack.c.b16 %v361, %v360
    %v451 = vpack.c.b16 %v363, %v362
    %v452 = vpack.c.b16 %v365, %v364
    %v453 = vpack.c.b16 %v367, %v366
    %v454 = vpack.c.b16 %v369, %v368
    %v455 = vpack.c.b16 %v371, %v370
    %v456 = vpack.c.b16 %v373, %v372
    %v457 = vpack.c.b16 %v375, %v374
    %v458 = vpack.c.b16 %v377, %v376
    %v459 = vpack.c.b16 %v379, %v378
    %v460 = vpack.c.b16 %v381, %v380
    %v461 = vpack.c.b16 %v383, %v382
    %v462 = vpack.c.b16 %v385, %v384
    %v463 = vpack.c.b16 %v387, %v386
    %v464 = vpack.c.b16 %v389, %v388
    %v465 = vpack.c.b16 %v391, %v390
    %v466 = vpack.c.b16 %v393, %v392
    %v467 = vpack.c.b16 %v395, %v394
    %v468 = vpack.c.b16 %v397, %v396
    %v469 = vpack.c.b16 %v399, %v398
    %v470 = vpack.c.b16 %v401, %v400
    %v471 = vpack.c.b16 %v403, %v402
    %v472 = vpack.c.b16 %v405, %v404
    %v473 = vpack.c.b16 %v407, %v406
    %v474 = vpack.c.b16 %v409, %v408
    %v475 = vpack.c.b16 %v411, %v410
    %v476 = vpack.c.b16 %v413, %v412
    %v477 = vpack.c.b16 %v415, %v414
    %v478 = vpack.c.b16 %v417, %v416
    %v479 = vpack.c.b16 %v419, %v418
    %v480 = vpack.c.b16 %v421, %v420
    %v481 = vpack.c.b16 %v423, %v422
    %v482 = vpack.c.b16 %v425, %v424
    %v483 = vpack.c.b16 %v427, %v426
    %v484 = vpack.c.b16 %v429, %v428
    %v485 = vpack.c.b16 %v431, %v430
    %v486 = vpack.c.b16 %v433, %v432
    %v487 = vpack.c.b16 %v435, %v434
    %v488 = vpack.c.b16 %v437, %v436
    %v489 = vpack.c.b16 %v439, %v438
    %v490 = vpack.c.b16 %v441, %v440
    %vm540 = vcmask 130048
    %v542 = vsel %vm540, %v140, 0
    %544 = vmatprep.subr.bf16.mxu0 0
    %545 = vmatpush1.bf16.msra.mxu0 %v449
    %546 = vmatprep.subr.bf16.mxu0 0
    %547 = vmatpush1.bf16.msra.mxu0 %v448
    %548 = vmatprep.subr.bf16.mxu0 0
    %549 = vmatpush1.bf16.msra.mxu0 %v447
    %550 = vmatprep.subr.bf16.mxu0 0
    %551 = vmatpush1.bf16.msra.mxu0 %v446
    %552 = vmatprep.subr.bf16.mxu0 0
    %553 = vmatpush1.bf16.msra.mxu0 %v445
    %554 = vmatprep.subr.bf16.mxu0 0
    %555 = vmatpush1.bf16.msra.mxu0 %v444
    %556 = vmatprep.subr.bf16.mxu0 0
    %557 = vmatpush1.bf16.msra.mxu0 %v443
    %558 = vmatprep.subr.bf16.mxu0 0
    %559 = vmatpush1.bf16.msra.mxu0 %v442
    %560 = vmatprep.subr.bf16.mxu0 0
    %561 = vmatpush2.bf16.msra.mxu0 %v457
    %562 = vmatprep.subr.bf16.mxu0 0
    %563 = vmatpush2.bf16.msra.mxu0 %v456
    %564 = vmatprep.subr.bf16.mxu0 0
    %565 = vmatpush2.bf16.msra.mxu0 %v455
    %566 = vmatprep.subr.bf16.mxu0 0
    %567 = vmatpush2.bf16.msra.mxu0 %v454
    %568 = vmatprep.subr.bf16.mxu0 0
    %569 = vmatpush2.bf16.msra.mxu0 %v453
    %570 = vmatprep.subr.bf16.mxu0 0
    %571 = vmatpush2.bf16.msra.mxu0 %v452
    %572 = vmatprep.subr.bf16.mxu0 0
    %573 = vmatpush2.bf16.msra.mxu0 %v451
    %574 = vmatprep.subr.bf16.mxu0 0
    %575 = vmatpush2.bf16.msra.mxu0 %v450
    %576 = vmatprep.mubr.bf16.mxu0 %v135
    %577 = vmatmul.mubr.bf16.gmra.mxu0 %v134
    %v578 = vpop.f32.mrf.mxu0
    %v579 = vadd.f32 %v244, %v578
    %v580 = vpop.f32.mrf.mxu0
    %v581 = vpop.f32.mrf.mxu0
    %v582 = vpop.f32.mrf.mxu0
    %583 = vdwg.mxu0
    %584 = vmatprep.subr.bf16.mxu0 0
    %585 = vmatpush1.bf16.msra.mxu0 %v465
    %586 = vmatprep.subr.bf16.mxu0 0
    %587 = vmatpush1.bf16.msra.mxu0 %v464
    %588 = vmatprep.subr.bf16.mxu0 0
    %589 = vmatpush1.bf16.msra.mxu0 %v463
    %590 = vmatprep.subr.bf16.mxu0 0
    %591 = vmatpush1.bf16.msra.mxu0 %v462
    %592 = vmatprep.subr.bf16.mxu0 0
    %593 = vmatpush1.bf16.msra.mxu0 %v461
    %594 = vmatprep.subr.bf16.mxu0 0
    %595 = vmatpush1.bf16.msra.mxu0 %v460
    %596 = vmatprep.subr.bf16.mxu0 0
    %597 = vmatpush1.bf16.msra.mxu0 %v459
    %598 = vmatprep.subr.bf16.mxu0 0
    %599 = vmatpush1.bf16.msra.mxu0 %v458
    %600 = vmatprep.subr.bf16.mxu0 0
    %601 = vmatpush2.bf16.msra.mxu0 %v473
    %602 = vmatprep.subr.bf16.mxu0 0
    %603 = vmatpush2.bf16.msra.mxu0 %v472
    %604 = vmatprep.subr.bf16.mxu0 0
    %605 = vmatpush2.bf16.msra.mxu0 %v471
    %606 = vmatprep.subr.bf16.mxu0 0
    %607 = vmatpush2.bf16.msra.mxu0 %v470
    %608 = vmatprep.subr.bf16.mxu0 0
    %609 = vmatpush2.bf16.msra.mxu0 %v469
    %610 = vmatprep.subr.bf16.mxu0 0
    %611 = vmatpush2.bf16.msra.mxu0 %v468
    %612 = vmatprep.subr.bf16.mxu0 0
    %613 = vmatpush2.bf16.msra.mxu0 %v467
    %614 = vmatprep.subr.bf16.mxu0 0
    %615 = vmatpush2.bf16.msra.mxu0 %v466
    %616 = vmatprep.mubr.bf16.mxu0 %v137
    %617 = vmatmul.mubr.bf16.gmra.mxu0 %v136
    %v618 = vpop.f32.mrf.mxu0
    %v619 = vadd.f32 %v579, %v618
    %v620 = vpop.f32.mrf.mxu0
    %v621 = vpop.f32.mrf.mxu0
    %v622 = vpop.f32.mrf.mxu0
    %623 = vdwg.mxu0
    %624 = vmatprep.subr.bf16.mxu0 0
    %625 = vmatpush1.bf16.msra.mxu0 %v481
    %626 = vmatprep.subr.bf16.mxu0 0
    %627 = vmatpush1.bf16.msra.mxu0 %v480
    %628 = vmatprep.subr.bf16.mxu0 0
    %629 = vmatpush1.bf16.msra.mxu0 %v479
    %630 = vmatprep.subr.bf16.mxu0 0
    %631 = vmatpush1.bf16.msra.mxu0 %v478
    %632 = vmatprep.subr.bf16.mxu0 0
    %633 = vmatpush1.bf16.msra.mxu0 %v477
    %634 = vmatprep.subr.bf16.mxu0 0
    %635 = vmatpush1.bf16.msra.mxu0 %v476
    %636 = vmatprep.subr.bf16.mxu0 0
    %637 = vmatpush1.bf16.msra.mxu0 %v475
    %638 = vmatprep.subr.bf16.mxu0 0
    %639 = vmatpush1.bf16.msra.mxu0 %v474
    %640 = vmatprep.subr.bf16.mxu0 0
    %641 = vmatpush2.bf16.msra.mxu0 %v489
    %642 = vmatprep.subr.bf16.mxu0 0
    %643 = vmatpush2.bf16.msra.mxu0 %v488
    %644 = vmatprep.subr.bf16.mxu0 0
    %645 = vmatpush2.bf16.msra.mxu0 %v487
    %646 = vmatprep.subr.bf16.mxu0 0
    %647 = vmatpush2.bf16.msra.mxu0 %v486
    %648 = vmatprep.subr.bf16.mxu0 0
    %649 = vmatpush2.bf16.msra.mxu0 %v485
    %650 = vmatprep.subr.bf16.mxu0 0
    %651 = vmatpush2.bf16.msra.mxu0 %v484
    %652 = vmatprep.subr.bf16.mxu0 0
    %653 = vmatpush2.bf16.msra.mxu0 %v483
    %654 = vmatprep.subr.bf16.mxu0 0
    %655 = vmatpush2.bf16.msra.mxu0 %v482
    %656 = vmatprep.mubr.bf16.mxu0 %v139
    %657 = vmatmul.mubr.bf16.gmra.mxu0 %v138
    %v658 = vpop.f32.mrf.mxu0
    %v659 = vadd.f32 %v619, %v658
    %v660 = vpop.f32.mrf.mxu0
    %v661 = vpop.f32.mrf.mxu0
    %v662 = vpop.f32.mrf.mxu0
    %663 = vdwg.mxu0
    %664 = vmatprep.subr.bf16.mxu0 0
    %665 = vmatpush1.bf16.msra.mxu0 0
    %666 = vmatprep.subr.bf16.mxu0 0
    %667 = vmatpush1.bf16.msra.mxu0 0
    %668 = vmatprep.subr.bf16.mxu0 0
    %669 = vmatpush1.bf16.msra.mxu0 0
    %670 = vmatprep.subr.bf16.mxu0 0
    %671 = vmatpush1.bf16.msra.mxu0 0
    %672 = vmatprep.subr.bf16.mxu0 0
    %673 = vmatpush1.bf16.msra.mxu0 0
    %674 = vmatprep.subr.bf16.mxu0 0
    %675 = vmatpush1.bf16.msra.mxu0 0
    %676 = vmatprep.subr.bf16.mxu0 0
    %677 = vmatpush1.bf16.msra.mxu0 0
    %678 = vmatprep.subr.bf16.mxu0 0
    %679 = vmatpush1.bf16.msra.mxu0 %v490
    %680 = vmatprep.subr.bf16.mxu0 0
    %681 = vmatpush2.bf16.msra.mxu0 0
    %682 = vmatprep.subr.bf16.mxu0 0
    %683 = vmatpush2.bf16.msra.mxu0 0
    %684 = vmatprep.subr.bf16.mxu0 0
    %685 = vmatpush2.bf16.msra.mxu0 0
    %686 = vmatprep.subr.bf16.mxu0 0
    %687 = vmatpush2.bf16.msra.mxu0 0
    %688 = vmatprep.subr.bf16.mxu0 0
    %689 = vmatpush2.bf16.msra.mxu0 0
    %690 = vmatprep.subr.bf16.mxu0 0
    %691 = vmatpush2.bf16.msra.mxu0 0
    %692 = vmatprep.subr.bf16.mxu0 0
    %693 = vmatpush2.bf16.msra.mxu0 0
    %694 = vmatprep.subr.bf16.mxu0 0
    %695 = vmatpush2.bf16.msra.mxu0 0
    %696 = vmatprep.mubr.bf16.mxu0 0
    %697 = vmatmul.mubr.bf16.gmra.mxu0 %v542
    %v698 = vpop.f32.mrf.mxu0
    %v699 = vadd.f32 %v659, %v698
    %v700 = vpop.f32.mrf.mxu0
    %v701 = vpop.f32.mrf.mxu0
    %v702 = vpop.f32.mrf.mxu0
    %703 = vdwg.mxu0
    %v704 = vmax.f32 %v699, 0.0
    %v705 = vpack.c.bf16 %v704, %v704
    %v706 = vld [vmem:[%s3] sm:$0xf]
    %v707 = vld [vmem:[%s3 + $0x4] sm:$0xf]
    %v708 = vld [vmem:[%s3 + $0x8] sm:$0xf]
    %v709 = vld [vmem:[%s3 + $0xc] sm:$0xf]
    %v710 = vld [vmem:[%s3 + $0x10] sm:$0xf]
    %v711 = vld [vmem:[%s3 + $0x14] sm:$0xf]
    %v712 = vld [vmem:[%s3 + $0x18] sm:$0xf]
    %v713 = vld [vmem:[%s3 + $0x1c] sm:$0xf]
    %v714 = vld [vmem:[%s4] sm:$0x1]
    %v716 = vlaneseq
    %v717 = vshrl.u32 %v716, 7
    %v718 = vsub.s32 0, %v717
    %v719 = vrot.slane %v714, %v718
    %v729 = vunpack.c.l.b16 %v706
    %v730 = vunpack.c.l.b16 %v707
    %v731 = vunpack.c.l.b16 %v708
    %v732 = vunpack.c.l.b16 %v709
    %v733 = vunpack.c.l.b16 %v710
    %v734 = vunpack.c.l.b16 %v711
    %v735 = vunpack.c.l.b16 %v712
    %v736 = vunpack.c.l.b16 %v713
    %v737 = vpack.c.b16 %v730, %v729
    %v738 = vpack.c.b16 %v732, %v731
    %v739 = vpack.c.b16 %v734, %v733
    %v740 = vpack.c.b16 %v736, %v735
    %vm745 = vcmask 523264
    %v747 = vsel %vm745, %v705, 0
    %749 = vmatprep.subr.bf16.mxu0 0
    %750 = vmatpush1.bf16.msra.mxu0 0
    %751 = vmatprep.subr.bf16.mxu0 0
    %752 = vmatpush1.bf16.msra.mxu0 0
    %753 = vmatprep.subr.bf16.mxu0 0
    %754 = vmatpush1.bf16.msra.mxu0 0
    %755 = vmatprep.subr.bf16.mxu0 0
    %756 = vmatpush1.bf16.msra.mxu0 0
    %757 = vmatprep.subr.bf16.mxu0 0
    %758 = vmatpush1.bf16.msra.mxu0 %v740
    %759 = vmatprep.subr.bf16.mxu0 0
    %760 = vmatpush1.bf16.msra.mxu0 %v739
    %761 = vmatprep.subr.bf16.mxu0 0
    %762 = vmatpush1.bf16.msra.mxu0 %v738
    %763 = vmatprep.subr.bf16.mxu0 0
    %764 = vmatpush1.bf16.msra.mxu0 %v737
    %765 = vmatprep.subr.bf16.mxu0 0
    %766 = vmatpush2.bf16.msra.mxu0 0
    %767 = vmatprep.subr.bf16.mxu0 0
    %768 = vmatpush2.bf16.msra.mxu0 0
    %769 = vmatprep.subr.bf16.mxu0 0
    %770 = vmatpush2.bf16.msra.mxu0 0
    %771 = vmatprep.subr.bf16.mxu0 0
    %772 = vmatpush2.bf16.msra.mxu0 0
    %773 = vmatprep.subr.bf16.mxu0 0
    %774 = vmatpush2.bf16.msra.mxu0 0
    %775 = vmatprep.subr.bf16.mxu0 0
    %776 = vmatpush2.bf16.msra.mxu0 0
    %777 = vmatprep.subr.bf16.mxu0 0
    %778 = vmatpush2.bf16.msra.mxu0 0
    %779 = vmatprep.subr.bf16.mxu0 0
    %780 = vmatpush2.bf16.msra.mxu0 0
    %781 = vmatprep.mubr.bf16.mxu0 0
    %782 = vmatmul.mubr.bf16.gmra.mxu0 %v747
    %v783 = vpop.f32.mrf.mxu0
    %v784 = vadd.f32 %v719, %v783
    %v785 = vpop.f32.mrf.mxu0
    %v786 = vpop.f32.mrf.mxu0
    %v787 = vpop.f32.mrf.mxu0
    %788 = vdwg.mxu0
    %v789 = vmax.f32 %v784, 0.0
    %v790 = vpack.c.bf16 %v789, %v789
    %v791 = vld [vmem:[%s5] sm:$0xf]
    %v792 = vld [vmem:[%s5 + $0x4] sm:$0xf]
    %v793 = vld [vmem:[%s5 + $0x8] sm:$0xf]
    %v794 = vld [vmem:[%s5 + $0xc] sm:$0xf]
    %v795 = vld [vmem:[%s5 + $0x10] sm:$0xf]
    %v796 = vld [vmem:[%s5 + $0x14] sm:$0xf]
    %v797 = vld [vmem:[%s5 + $0x18] sm:$0xf]
    %v798 = vld [vmem:[%s5 + $0x1c] sm:$0xf]
    %v799 = vld [vmem:[%s6] sm:$0x1]
    %v801 = vlaneseq
    %v802 = vshrl.u32 %v801, 7
    %v803 = vsub.s32 0, %v802
    %v804 = vrot.slane %v799, %v803
    %v814 = vunpack.c.l.b16 %v791
    %v815 = vunpack.c.l.b16 %v792
    %v816 = vunpack.c.l.b16 %v793
    %v817 = vunpack.c.l.b16 %v794
    %v818 = vunpack.c.l.b16 %v795
    %v819 = vunpack.c.l.b16 %v796
    %v820 = vunpack.c.l.b16 %v797
    %v821 = vunpack.c.l.b16 %v798
    %v822 = vpack.c.b16 %v815, %v814
    %v823 = vpack.c.b16 %v817, %v816
    %v824 = vpack.c.b16 %v819, %v818
    %v825 = vpack.c.b16 %v821, %v820
    %v831 = vsel %vm745, %v790, 0
    %833 = vmatprep.subr.bf16.mxu0 0
    %834 = vmatpush1.bf16.msra.mxu0 0
    %835 = vmatprep.subr.bf16.mxu0 0
    %836 = vmatpush1.bf16.msra.mxu0 0
    %837 = vmatprep.subr.bf16.mxu0 0
    %838 = vmatpush1.bf16.msra.mxu0 0
    %839 = vmatprep.subr.bf16.mxu0 0
    %840 = vmatpush1.bf16.msra.mxu0 0
    %841 = vmatprep.subr.bf16.mxu0 0
    %842 = vmatpush1.bf16.msra.mxu0 %v825
    %843 = vmatprep.subr.bf16.mxu0 0
    %844 = vmatpush1.bf16.msra.mxu0 %v824
    %845 = vmatprep.subr.bf16.mxu0 0
    %846 = vmatpush1.bf16.msra.mxu0 %v823
    %847 = vmatprep.subr.bf16.mxu0 0
    %848 = vmatpush1.bf16.msra.mxu0 %v822
    %849 = vmatprep.subr.bf16.mxu0 0
    %850 = vmatpush2.bf16.msra.mxu0 0
    %851 = vmatprep.subr.bf16.mxu0 0
    %852 = vmatpush2.bf16.msra.mxu0 0
    %853 = vmatprep.subr.bf16.mxu0 0
    %854 = vmatpush2.bf16.msra.mxu0 0
    %855 = vmatprep.subr.bf16.mxu0 0
    %856 = vmatpush2.bf16.msra.mxu0 0
    %857 = vmatprep.subr.bf16.mxu0 0
    %858 = vmatpush2.bf16.msra.mxu0 0
    %859 = vmatprep.subr.bf16.mxu0 0
    %860 = vmatpush2.bf16.msra.mxu0 0
    %861 = vmatprep.subr.bf16.mxu0 0
    %862 = vmatpush2.bf16.msra.mxu0 0
    %863 = vmatprep.subr.bf16.mxu0 0
    %864 = vmatpush2.bf16.msra.mxu0 0
    %865 = vmatprep.mubr.bf16.mxu0 0
    %866 = vmatmul.mubr.bf16.gmra.mxu0 %v831
    %v867 = vpop.f32.mrf.mxu0
    %v868 = vadd.f32 %v804, %v867
    %v869 = vpop.f32.mrf.mxu0
    %v870 = vpop.f32.mrf.mxu0
    %v871 = vpop.f32.mrf.mxu0
    %872 = vdwg.mxu0
    %v873 = vmax.f32 %v868, 0.0
    %v874 = vpack.c.bf16 %v873, %v873
    %v875 = vld [vmem:[%s7] sm:$0xf]
    %v876 = vld [vmem:[%s7 + $0x4] sm:$0xf]
    %v877 = vld [vmem:[%s7 + $0x8] sm:$0xf]
    %v878 = vld [vmem:[%s7 + $0xc] sm:$0xf]
    %v879 = vld [vmem:[%s7 + $0x10] sm:$0xf]
    %v880 = vld [vmem:[%s7 + $0x14] sm:$0xf]
    %v881 = vld [vmem:[%s7 + $0x18] sm:$0xf]
    %v882 = vld [vmem:[%s7 + $0x1c] sm:$0xf]
    %v883 = vld [vmem:[%s8] sm:$0x1]
    %v885 = vlaneseq
    %v886 = vshrl.u32 %v885, 7
    %v887 = vsub.s32 0, %v886
    %v888 = vrot.slane %v883, %v887
    %v898 = vunpack.c.l.b16 %v875
    %v899 = vunpack.c.l.b16 %v876
    %v900 = vunpack.c.l.b16 %v877
    %v901 = vunpack.c.l.b16 %v878
    %v902 = vunpack.c.l.b16 %v879
    %v903 = vunpack.c.l.b16 %v880
    %v904 = vunpack.c.l.b16 %v881
    %v905 = vunpack.c.l.b16 %v882
    %v906 = vpack.c.b16 %v899, %v898
    %v907 = vpack.c.b16 %v901, %v900
    %v908 = vpack.c.b16 %v903, %v902
    %v909 = vpack.c.b16 %v905, %v904
    %v915 = vsel %vm745, %v874, 0
    %917 = vmatprep.subr.bf16.mxu0 0
    %918 = vmatpush1.bf16.msra.mxu0 0
    %919 = vmatprep.subr.bf16.mxu0 0
    %920 = vmatpush1.bf16.msra.mxu0 0
    %921 = vmatprep.subr.bf16.mxu0 0
    %922 = vmatpush1.bf16.msra.mxu0 0
    %923 = vmatprep.subr.bf16.mxu0 0
    %924 = vmatpush1.bf16.msra.mxu0 0
    %925 = vmatprep.subr.bf16.mxu0 0
    %926 = vmatpush1.bf16.msra.mxu0 %v909
    %927 = vmatprep.subr.bf16.mxu0 0
    %928 = vmatpush1.bf16.msra.mxu0 %v908
    %929 = vmatprep.subr.bf16.mxu0 0
    %930 = vmatpush1.bf16.msra.mxu0 %v907
    %931 = vmatprep.subr.bf16.mxu0 0
    %932 = vmatpush1.bf16.msra.mxu0 %v906
    %933 = vmatprep.subr.bf16.mxu0 0
    %934 = vmatpush2.bf16.msra.mxu0 0
    %935 = vmatprep.subr.bf16.mxu0 0
    %936 = vmatpush2.bf16.msra.mxu0 0
    %937 = vmatprep.subr.bf16.mxu0 0
    %938 = vmatpush2.bf16.msra.mxu0 0
    %939 = vmatprep.subr.bf16.mxu0 0
    %940 = vmatpush2.bf16.msra.mxu0 0
    %941 = vmatprep.subr.bf16.mxu0 0
    %942 = vmatpush2.bf16.msra.mxu0 0
    %943 = vmatprep.subr.bf16.mxu0 0
    %944 = vmatpush2.bf16.msra.mxu0 0
    %945 = vmatprep.subr.bf16.mxu0 0
    %946 = vmatpush2.bf16.msra.mxu0 0
    %947 = vmatprep.subr.bf16.mxu0 0
    %948 = vmatpush2.bf16.msra.mxu0 0
    %949 = vmatprep.mubr.bf16.mxu0 0
    %950 = vmatmul.mubr.bf16.gmra.mxu0 %v915
    %v951 = vpop.f32.mrf.mxu0
    %v952 = vadd.f32 %v888, %v951
    %v953 = vpop.f32.mrf.mxu0
    %v954 = vpop.f32.mrf.mxu0
    %v955 = vpop.f32.mrf.mxu0
    %956 = vdwg.mxu0
    %v957 = vmax.f32 %v952, 0.0
    %v958 = vpack.c.bf16 %v957, %v957
    %v959 = vld [vmem:[%s9] sm:$0xf]
    %v960 = vld [vmem:[%s9 + $0x4] sm:$0xf]
    %v961 = vld [vmem:[%s9 + $0x8] sm:$0xf]
    %v962 = vld [vmem:[%s9 + $0xc] sm:$0xf]
    %v963 = vld [vmem:[%s9 + $0x10] sm:$0xf]
    %v964 = vld [vmem:[%s9 + $0x14] sm:$0xf]
    %v965 = vld [vmem:[%s9 + $0x18] sm:$0xf]
    %v966 = vld [vmem:[%s9 + $0x1c] sm:$0xf]
    %v967 = vld [vmem:[%s10] sm:$0x1]
    %v969 = vlaneseq
    %v970 = vshrl.u32 %v969, 7
    %v971 = vsub.s32 0, %v970
    %v972 = vrot.slane %v967, %v971
    %v982 = vunpack.c.l.b16 %v959
    %v983 = vunpack.c.l.b16 %v960
    %v984 = vunpack.c.l.b16 %v961
    %v985 = vunpack.c.l.b16 %v962
    %v986 = vunpack.c.l.b16 %v963
    %v987 = vunpack.c.l.b16 %v964
    %v988 = vunpack.c.l.b16 %v965
    %v989 = vunpack.c.l.b16 %v966
    %v990 = vpack.c.b16 %v983, %v982
    %v991 = vpack.c.b16 %v985, %v984
    %v992 = vpack.c.b16 %v987, %v986
    %v993 = vpack.c.b16 %v989, %v988
    %v999 = vsel %vm745, %v958, 0
    %1001 = vmatprep.subr.bf16.mxu0 0
    %1002 = vmatpush1.bf16.msra.mxu0 0
    %1003 = vmatprep.subr.bf16.mxu0 0
    %1004 = vmatpush1.bf16.msra.mxu0 0
    %1005 = vmatprep.subr.bf16.mxu0 0
    %1006 = vmatpush1.bf16.msra.mxu0 0
    %1007 = vmatprep.subr.bf16.mxu0 0
    %1008 = vmatpush1.bf16.msra.mxu0 0
    %1009 = vmatprep.subr.bf16.mxu0 0
    %1010 = vmatpush1.bf16.msra.mxu0 %v993
    %1011 = vmatprep.subr.bf16.mxu0 0
    %1012 = vmatpush1.bf16.msra.mxu0 %v992
    %1013 = vmatprep.subr.bf16.mxu0 0
    %1014 = vmatpush1.bf16.msra.mxu0 %v991
    %1015 = vmatprep.subr.bf16.mxu0 0
    %1016 = vmatpush1.bf16.msra.mxu0 %v990
    %1017 = vmatprep.subr.bf16.mxu0 0
    %1018 = vmatpush2.bf16.msra.mxu0 0
    %1019 = vmatprep.subr.bf16.mxu0 0
    %1020 = vmatpush2.bf16.msra.mxu0 0
    %1021 = vmatprep.subr.bf16.mxu0 0
    %1022 = vmatpush2.bf16.msra.mxu0 0
    %1023 = vmatprep.subr.bf16.mxu0 0
    %1024 = vmatpush2.bf16.msra.mxu0 0
    %1025 = vmatprep.subr.bf16.mxu0 0
    %1026 = vmatpush2.bf16.msra.mxu0 0
    %1027 = vmatprep.subr.bf16.mxu0 0
    %1028 = vmatpush2.bf16.msra.mxu0 0
    %1029 = vmatprep.subr.bf16.mxu0 0
    %1030 = vmatpush2.bf16.msra.mxu0 0
    %1031 = vmatprep.subr.bf16.mxu0 0
    %1032 = vmatpush2.bf16.msra.mxu0 0
    %1033 = vmatprep.mubr.bf16.mxu0 0
    %1034 = vmatmul.mubr.bf16.gmra.mxu0 %v999
    %v1035 = vpop.f32.mrf.mxu0
    %v1036 = vadd.f32 %v972, %v1035
    %v1037 = vpop.f32.mrf.mxu0
    %v1038 = vpop.f32.mrf.mxu0
    %v1039 = vpop.f32.mrf.mxu0
    %1040 = vdwg.mxu0
    %vm1041 = vcmask 261120
    %1042 = vst.msk [vmem:[#allocation2] sm:$0xff] %vm1041, %v1036
    // Predicated region
    $region46: #{single_encoder_forward.1} parent=1 // pred_check
      _
    $region47: #{single_encoder_forward.1} parent=1 // pred_check_branch
      %1044 = sbr.rel (0) target = $region49
    $region48: #{single_encoder_forward.1} parent=1 // pred_region
      %s1046 = ssub.s32 128, 32
      %1047 = vsyncadd [#allocation3], %s1046
      %s1048 = sshll.u32 [#allocation2], 4
      %s1049 = int_to_ptr.vmem [resolvable:$true] %s1048
      %1054 = dma.vmem_to_hbm [thread:$0]  %s1049, 32, %s11, [#allocation3], 32, 32, 2
    $region49: #{single_encoder_forward.1} parent=1 // pred_fallthru
      _
    // Predicated region
    $region50: #{single_encoder_forward.1} parent=1 // pred_check
      _
    $region51: #{single_encoder_forward.1} parent=1 // pred_check_branch
      %1056 = sbr.rel (0) target = $region53
    $region52: #{single_encoder_forward.1} parent=1 // pred_region
      %1057 = dma.done [#allocation3], 128
    $region53: #{single_encoder_forward.1} parent=1 // pred_fallthru
      _
    %1058 = vsyncpa [#allocation3], 1

</llo_original>
